<compile_context>
chip_gen: v7x
topology: tpu7x:2x2x1
jax: 0.10.0
libtpu: 0.0.40
codegen_flags: <defaults>
</compile_context>

<pallas_src>
import jax
import jax.numpy as jnp
from jax import lax
from jax.experimental import pallas as pl
from jax.experimental.pallas import tpu as pltpu

_VMEM = pltpu.MemorySpace.VMEM


def _task_covariance(covar_factor_ref, log_var_ref):
    """covar_factor @ covar_factor.T + diag(exp(log_var)) on one VMEM tile (f32)."""
    b = covar_factor_ref[...].astype(jnp.float32)                    # (n_tasks, rank)
    # Contract on the rank axis of BOTH operands -> no materialized b.T.
    cov = lax.dot_general(
        b, b, dimension_numbers=(((1,), (1,)), ((), ())),
        preferred_element_type=jnp.float32)                          # (n_tasks, n_tasks)
    var = jnp.exp(log_var_ref[...].astype(jnp.float32))              # (1, n_tasks) -> EUP
    n = cov.shape[0]
    row = lax.broadcasted_iota(jnp.int32, (n, n), 0)
    col = lax.broadcasted_iota(jnp.int32, (n, n), 1)
    return cov + jnp.where(row == col, var, 0.0)


def _covar_full_kernel(covar_factor_ref, log_var_ref, out_ref):
    out_ref[...] = _task_covariance(covar_factor_ref, log_var_ref).astype(out_ref.dtype)


def _covar_gather_kernel(covar_factor_ref, log_var_ref, i1_ref, i2_ref, out_ref):
    cov = _task_covariance(covar_factor_ref, log_var_ref)            # (n, n) f32
    n = cov.shape[0]
    i1 = i1_ref[...]                                                 # (M, 1) int32
    i2 = i2_ref[...]                                                 # (P, 1) int32
    m, p = i1.shape[0], i2.shape[0]
    # One-hot row/col selectors built on the VPU; the gather becomes two tiny
    # contractions fully fused in-kernel (no HBM round trip, no extra XLA op).
    sel1 = (lax.broadcasted_iota(jnp.int32, (m, n), 1) == i1).astype(jnp.float32)  # (M, n)
    sel2 = (lax.broadcasted_iota(jnp.int32, (p, n), 1) == i2).astype(jnp.float32)  # (P, n)
    rows = lax.dot_general(
        sel1, cov, dimension_numbers=(((1,), (0,)), ((), ())),
        preferred_element_type=jnp.float32)                          # (M, n)
    out = lax.dot_general(
        rows, sel2, dimension_numbers=(((1,), (1,)), ((), ())),
        preferred_element_type=jnp.float32)                          # (M, P)
    out_ref[...] = out.astype(out_ref.dtype)


def compute_covar_matrix(covar_factor, log_var):
    """Full task covariance matrix (i1 = i2 = None case), single pallas_call."""
    n_tasks, rank = covar_factor.shape
    log_var_2d = jnp.reshape(log_var, (1, n_tasks))
    return pl.pallas_call(
        _covar_full_kernel,
        out_shape=jax.ShapeDtypeStruct((n_tasks, n_tasks), covar_factor.dtype),
        in_specs=[
            pl.BlockSpec((n_tasks, rank), lambda: (0, 0), memory_space=_VMEM),
            pl.BlockSpec((1, n_tasks), lambda: (0, 0), memory_space=_VMEM),
        ],
        out_specs=pl.BlockSpec((n_tasks, n_tasks), lambda: (0, 0), memory_space=_VMEM),
    )(covar_factor, log_var_2d)


def compute_indexed_covar(covar_factor, log_var, i1, i2):
    """Fused covariance + index_select(0, i1) + index_select(1, i2), single pallas_call."""
    n_tasks, rank = covar_factor.shape
    log_var_2d = jnp.reshape(log_var, (1, n_tasks))
    i1_col = jnp.reshape(i1, (-1, 1)).astype(jnp.int32)
    i2_col = jnp.reshape(i2, (-1, 1)).astype(jnp.int32)
    m, p = i1_col.shape[0], i2_col.shape[0]
    return pl.pallas_call(
        _covar_gather_kernel,
        out_shape=jax.ShapeDtypeStruct((m, p), covar_factor.dtype),
        in_specs=[
            pl.BlockSpec((n_tasks, rank), lambda: (0, 0), memory_space=_VMEM),
            pl.BlockSpec((1, n_tasks), lambda: (0, 0), memory_space=_VMEM),
            pl.BlockSpec((m, 1), lambda: (0, 0), memory_space=_VMEM),
            pl.BlockSpec((p, 1), lambda: (0, 0), memory_space=_VMEM),
        ],
        out_specs=pl.BlockSpec((m, p), lambda: (0, 0), memory_space=_VMEM),
    )(covar_factor, log_var_2d, i1_col, i2_col)


def index_kernel_forward(covar_factor, log_var, i1=None, i2=None):
    """Mirrors IndexKernel.forward semantics exactly."""
    if i1 is None and i2 is None:
        return compute_covar_matrix(covar_factor, log_var)
    if i1 is None or i2 is None:
        shared = i1 if i1 is not None else i2
        i1 = i2 = shared
    return compute_indexed_covar(covar_factor, log_var, i1, i2)


if __name__ == "__main__":
    key = jax.random.PRNGKey(0)
    k1, k2, k3, k4 = jax.random.split(key, 4)

    n_tasks, rank = 8, 2
    # Deterministic "randn"-style parameter init (matches torch.randn shapes).
    covar_factor = jax.random.normal(k1, (n_tasks, rank), dtype=jnp.float32)
    log_var = jax.random.normal(k2, (n_tasks,), dtype=jnp.float32)

    # Example task-index inputs (like i1, i2 LongTensors in PyTorch).
    i1 = jax.random.randint(k3, (6,), 0, n_tasks, dtype=jnp.int32)
    i2 = jax.random.randint(k4, (6,), 0, n_tasks, dtype=jnp.int32)

    # Case 1: full covariance matrix (i1 = i2 = None).
    full_cov = jax.block_until_ready(index_kernel_forward(covar_factor, log_var))

    # Case 2: indexed covariance (gather fused inside the kernel).
    out = jax.block_until_ready(index_kernel_forward(covar_factor, log_var, i1, i2))

    # Case 3: only one index given -> used for both rows and cols.
    out_one = jax.block_until_ready(index_kernel_forward(covar_factor, log_var, i1, None))

    # Pure-JAX reference for correctness sanity check.
    ref_cov = covar_factor @ covar_factor.T + jnp.diag(jnp.exp(log_var))
    ref_out = ref_cov[i1][:, i2]
    ref_out_one = ref_cov[i1][:, i1]

    assert full_cov.shape == (n_tasks, n_tasks)
    assert out.shape == (i1.shape[0], i2.shape[0])
    assert out_one.shape == (i1.shape[0], i1.shape[0])
    assert jnp.allclose(full_cov, ref_cov, atol=1e-5, rtol=1e-5)
    assert jnp.allclose(out, ref_out, atol=1e-5, rtol=1e-5)
    assert jnp.allclose(out_one, ref_out_one, atol=1e-5, rtol=1e-5)

    print("KERNEL_OK")
</pallas_src>

<mosaic_0001>
module attributes {stable_mosaic.version = 11 : i64} {
  func.func @_covar_full_kernel(%arg0: memref<8x2xf32, #tpu.memory_space<vmem>>, %arg1: memref<1x8xf32, #tpu.memory_space<vmem>>, %arg2: memref<8x8xf32, #tpu.memory_space<vmem>>) attributes {dimension_semantics = [], scalar_prefetch = 0 : i64, scratch_operands = 0 : i64, tpu.core_type = #tpu.core_type<tc>} {
    %c0 = arith.constant 0 : index
    %c0_0 = arith.constant 0 : index
    %0 = vector.load %arg0[%c0, %c0_0] : memref<8x2xf32, #tpu.memory_space<vmem>>, vector<8x2xf32>
    %cst = arith.constant dense<0.000000e+00> : vector<8x8xf32>
    %1 = tpu.matmul %0, %0, %cst {dimension_numbers = #tpu.dot_dimension_numbers<[1], [1], [0], [0], [0, 0, 1, 0], [], []>} : vector<8x2xf32>, vector<8x2xf32>, vector<8x8xf32> -> vector<8x8xf32>
    %c0_1 = arith.constant 0 : index
    %c0_2 = arith.constant 0 : index
    %2 = vector.load %arg1[%c0_1, %c0_2] : memref<1x8xf32, #tpu.memory_space<vmem>>, vector<1x8xf32>
    %3 = math.exp %2 : vector<1x8xf32>
    %4 = tpu.iota {dimensions = array<i32: 0>} : vector<8x8xi32>
    %5 = tpu.iota {dimensions = array<i32: 1>} : vector<8x8xi32>
    %6 = arith.cmpi eq, %4, %5 : vector<8x8xi32>
    %cst_3 = arith.constant 0.000000e+00 : f32
    %7 = vector.shape_cast %3 : vector<1x8xf32> to vector<1x8xf32>
    %8 = vector.broadcast %7 : vector<1x8xf32> to vector<8x8xf32>
    %9 = vector.broadcast %cst_3 : f32 to vector<8x8xf32>
    %10 = arith.select %6, %8, %9 : vector<8x8xi1>, vector<8x8xf32>
    %11 = arith.addf %1, %10 : vector<8x8xf32>
    %c0_4 = arith.constant 0 : index
    %c0_5 = arith.constant 0 : index
    %12 = vector.load %arg2[%c0_4, %c0_5] : memref<8x8xf32, #tpu.memory_space<vmem>>, vector<8x8xf32>
    tpu.vector_store %arg2[%c0_4, %c0_5], %11 {strides = array<i32>} : memref<8x8xf32, #tpu.memory_space<vmem>>, vector<8x8xf32>,
    return
  }
}

</mosaic_0001>

<llo_original>
// kernel: tpu_custom_call.1
$region0: #{tpu_custom_call.1}
  #allocation0 [shape = 'u32[]', space=smem, size = 0x4, offset = 0x4, fixed_abs, tag = 'smem constant byte address 0x4 - core index']
  #allocation1 [shape = 'u32[144,128]{1,0:T(1,128)}', space=vmem, size = 0x12000, scoped, tag = 'internal scratch']
  %s0 = inlined_call_operand.vmem [shape: f32[8,2], index: 0, kind: input, shape index: {}]
  %s1 = inlined_call_operand.vmem [shape: f32[1,8], index: 1, kind: input, shape index: {}]
  %s2 = inlined_call_operand.hbm [shape: f32[8,8], index: 2, kind: output, shape index: {}]
  %s3 = sld [smem:[#allocation0]]
  $region18: #{tpu_custom_call.1} parent=0
    _
  %s5 = ssub.s32 1, %s3
  %s6 = scalar_select 0, %s5, %s3
  $region1: #{tpu_custom_call.1} parent=0
    #allocation2 [shape = 'u8[4096]{0}', space=vmem, size = 0x1000, scoped, tag = 'output window, operand 0, single buffered']
    #allocation3 [shape = 's32[1]{0}', space=sflag, size = 0x4, scoped, tag = 'scoped memory for tpu_custom_call.1']
    %7 = vsyncpa [#allocation3], 0
    // Predicated region
    $region2: #{tpu_custom_call.1} parent=1 // pred_check
      _
    $region3: #{tpu_custom_call.1} parent=1 // pred_check_branch
      %9 = sbr.rel (0) target = $region5
    $region4: #{tpu_custom_call.1} parent=1 // pred_region
      _
    $region5: #{tpu_custom_call.1} parent=1 // pred_fallthru
      _
    // Predicated region
    $region6: #{tpu_custom_call.1} parent=1 // pred_check
      _
    $region7: #{tpu_custom_call.1} parent=1 // pred_check_branch
      %11 = sbr.rel (0) target = $region9
    $region8: #{tpu_custom_call.1} parent=1 // pred_region
      _
    $region9: #{tpu_custom_call.1} parent=1 // pred_fallthru
      _
    %v12 = vld [vmem:[%s0] sm:$0xff]
    %v13 = vld [vmem:[%s1] sm:$0x1]
    %v14 = vmul.f32 %v13, 1.442695
    %v15 = vpow.pop %v14
    %v16 = vlaneseq
    %v17 = vshrl.u32 %v16, 7
    %v18 = vlaneseq
    %v19 = vand.u32 %v18, 127
    %vm20 = vcmp.eq.s32.totalorder %v17, %v19
    %v22 = vlaneseq
    %v23 = vshrl.u32 %v22, 7
    %v24 = vsub.s32 0, %v23
    %v25 = vrot.slane %v15, %v24
    %v27 = vsel %vm20, %v25, 0.0
    %vm28 = vcmask 15360
    %v30 = vsel %vm28, %v12, 0
    %32 = vmatprep.subr.mxu0 0.0
    %33 = vmatpush1.xpose.msra.mxu0 %v30
    %34 = vmatprep.subr.mxu0 0.0
    %35 = vmatpush1.xpose.msra.mxu0 0.0
    %36 = vmatprep.subr.mxu0 0.0
    %37 = vmatpush1.xpose.msra.mxu0 0.0
    %38 = vmatprep.subr.mxu0 0.0
    %39 = vmatpush1.xpose.msra.mxu0 0.0
    %40 = vmatprep.subr.mxu0 0.0
    %41 = vmatpush1.xpose.msra.mxu0 0.0
    %42 = vmatprep.subr.mxu0 0.0
    %43 = vmatpush1.xpose.msra.mxu0 0.0
    %44 = vmatprep.subr.mxu0 0.0
    %45 = vmatpush1.xpose.msra.mxu0 0.0
    %46 = vmatprep.subr.mxu0 0.0
    %47 = vmatpush1.xpose.msra.mxu0 0.0
    %48 = vmatprep.subr.mxu0 0.0
    %49 = vmatpush1.xpose.msra.mxu0 0.0
    %50 = vmatprep.subr.mxu0 0.0
    %51 = vmatpush1.xpose.msra.mxu0 0.0
    %52 = vmatprep.subr.mxu0 0.0
    %53 = vmatpush1.xpose.msra.mxu0 0.0
    %54 = vmatprep.subr.mxu0 0.0
    %55 = vmatpush1.xpose.msra.mxu0 0.0
    %56 = vmatprep.subr.mxu0 0.0
    %57 = vmatpush1.xpose.msra.mxu0 0.0
    %58 = vmatprep.subr.mxu0 0.0
    %59 = vmatpush1.xpose.msra.mxu0 0.0
    %60 = vmatprep.subr.mxu0 0.0
    %61 = vmatpush1.xpose.msra.mxu0 0.0
    %62 = vmatprep.subr.mxu0 0.0
    %63 = vmatpush1.xpose.msra.mxu0 0.0
    %64 = vmatprep.subr.mxu0 0.0
    %65 = vmatpush1.xpose.msra.mxu0 0.0
    %66 = vmatprep.subr.mxu0 0.0
    %67 = vmatpush1.xpose.msra.mxu0 0.0
    %68 = vmatprep.subr.mxu0 0.0
    %69 = vmatpush1.xpose.msra.mxu0 0.0
    %70 = vmatprep.subr.mxu0 0.0
    %71 = vmatpush1.xpose.msra.mxu0 0.0
    %72 = vmatprep.subr.mxu0 0.0
    %73 = vmatpush1.xpose.msra.mxu0 0.0
    %74 = vmatprep.subr.mxu0 0.0
    %75 = vmatpush1.xpose.msra.mxu0 0.0
    %76 = vmatprep.subr.mxu0 0.0
    %77 = vmatpush1.xpose.msra.mxu0 0.0
    %78 = vmatprep.subr.mxu0 0.0
    %79 = vmatpush1.xpose.msra.mxu0 0.0
    %80 = vmatprep.subr.mxu0 0.0
    %81 = vmatpush1.xpose.msra.mxu0 0.0
    %82 = vmatprep.subr.mxu0 0.0
    %83 = vmatpush1.xpose.msra.mxu0 0.0
    %84 = vmatprep.subr.mxu0 0.0
    %85 = vmatpush1.xpose.msra.mxu0 0.0
    %86 = vmatprep.subr.mxu0 0.0
    %87 = vmatpush1.xpose.msra.mxu0 0.0
    %88 = vmatprep.subr.mxu0 0.0
    %89 = vmatpush1.xpose.msra.mxu0 0.0
    %90 = vmatprep.subr.mxu0 0.0
    %91 = vmatpush1.xpose.msra.mxu0 0.0
    %92 = vmatprep.subr.mxu0 0.0
    %93 = vmatpush1.xpose.msra.mxu0 0.0
    %94 = vmatprep.subr.mxu0 0.0
    %95 = vmatpush1.xpose.msra.mxu0 0.0
    %96 = vmatprep.mubr.f32.mxu0 0.0
    %97 = vmatmul.mubr.f32.gmra.mrb[0].mxu0 %v30
    %v98 = vpop.f32.mrb[0].mxu0
    %v99 = vadd.f32 %v27, %v98
    %v100 = vpop.f32.mrb[0].mxu0
    %101 = vdwg.mxu0
    %vm102 = vcmask 64512
    %103 = vst.msk [vmem:[#allocation2] sm:$0xff] %vm102, %v99
    // Predicated region
    $region10: #{tpu_custom_call.1} parent=1 // pred_check
      _
    $region11: #{tpu_custom_call.1} parent=1 // pred_check_branch
      %105 = sbr.rel (0) target = $region13
    $region12: #{tpu_custom_call.1} parent=1 // pred_region
      %s107 = ssub.s32 128, 128
      %108 = vsyncadd [#allocation3], %s107
      %s110 = sshll.u32 [#allocation2], 4
      %s111 = int_to_ptr.vmem [resolvable:$true] %s110
      %113 = dma.vmem_to_hbm [thread:$0]  %s111, 128, %s2, [#allocation3]
    $region13: #{tpu_custom_call.1} parent=1 // pred_fallthru
      _
    // Predicated region
    $region14: #{tpu_custom_call.1} parent=1 // pred_check
      _
    $region15: #{tpu_custom_call.1} parent=1 // pred_check_branch
      %115 = sbr.rel (0) target = $region17
    $region16: #{tpu_custom_call.1} parent=1 // pred_region
      %116 = dma.done [#allocation3], 128
    $region17: #{tpu_custom_call.1} parent=1 // pred_fallthru
      _
    %117 = vsyncpa [#allocation3], 1

</llo_original>
